<compile_context>
chip_gen: v7x
topology: tpu7x:2x2x1
jax: 0.10.0
libtpu: 0.0.40
codegen_flags: <defaults>
</compile_context>

<pallas_src>
import functools
import math

import jax
import jax.numpy as jnp
from jax import lax
from jax.experimental import pallas as pl
from jax.experimental.pallas import tpu as pltpu


def _embedder_kernel(ids_ref, table_ref, pe_ref, out_ref):
    # ids_ref   : (B * S_pad,) int32   scalar-prefetch operand in SMEM
    # table_ref : (V, D)               embedding table, resident in VMEM (single-buffered)
    # pe_ref    : (S_pad, D)           whole positional-encoding slab, resident in VMEM
    # out_ref   : (1, TS, D)           output tile for (seq-tile s, batch b)
    s = pl.program_id(0)
    b = pl.program_id(1)
    _, TS, D = out_ref.shape
    S_pad = pe_ref.shape[0]
    num_groups = TS // 8                       # TS is always a multiple of 8

    scale = jnp.float32(math.sqrt(D))
    tok_base = b * S_pad + s * TS              # flat token index of this tile's first row
    pe_base = s * TS                           # row offset into the resident PE slab

    def group(g, carry):
        r0 = pl.multiple_of(g * 8, 8)
        # Gather 8 embedding rows via scalar-indexed dynamic sublane reads (ids come from
        # SMEM -> pure scalar/addressing path; no one-hot, no MXU).
        rows = [table_ref[pl.ds(ids_ref[tok_base + r0 + j], 1), :] for j in range(8)]
        emb = jnp.concatenate(rows, axis=0).astype(jnp.float32)               # (8, D)
        pe = pe_ref[pl.ds(pl.multiple_of(pe_base + r0, 8), 8), :].astype(jnp.float32)
        # One fused mul+add, one aligned (8, D) store straight into the output tile.
        out_ref[0, pl.ds(r0, 8), :] = (emb * scale + pe).astype(out_ref.dtype)
        return carry

    lax.fori_loop(0, num_groups, group, 0, unroll=min(8, num_groups))
    # TODO(synk): Dropout(p=0.1) is identity (eval mode); no stochastic mask applied.


def make_positional_encoding(dim_positional: int, max_len: int = 512) -> jnp.ndarray:
    """Reproduces the PyTorch PositionalEncoding buffer exactly: (max_len, dim_positional)."""
    position = jnp.arange(0, max_len, dtype=jnp.float32)[:, None]
    div_term = jnp.exp(
        jnp.arange(0, dim_positional, 2, dtype=jnp.float32)
        * (-(math.log(10000.0) / dim_positional))
    )
    angles = position * div_term
    pe = jnp.zeros((max_len, dim_positional), dtype=jnp.float32)
    pe = pe.at[:, 0::2].set(jnp.sin(angles))
    pe = pe.at[:, 1::2].set(jnp.cos(angles))
    return pe


def _round_up(x: int, m: int) -> int:
    return ((x + m - 1) // m) * m


def _pick_seq_tile(s_pad: int, max_tile: int = 1024) -> int:
    """Largest multiple-of-8 divisor of s_pad that is <= max_tile (s_pad is a multiple of 8)."""
    start = min(s_pad, max_tile)
    start -= start % 8
    for cand in range(start, 7, -8):
        if s_pad % cand == 0:
            return cand
    return 8


@functools.partial(jax.jit, static_argnames=("max_seq_tile",))
def simple_embedder_forward(ids, table, pe_buffer, *, max_seq_tile=1024):
    """ids: (B, S) int; table: (V, D); pe_buffer: (max_len, D). Returns (B, S, D)."""
    B, S = ids.shape
    V, D = table.shape
    out_dtype = table.dtype

    # Pad the sequence axis to a multiple of 8 -> sublane-aligned tiles, unmasked stores,
    # and 8-row gather groups that never straddle a tile edge.
    S_pad = _round_up(S, 8)
    TS = _pick_seq_tile(S_pad, max_seq_tile)
    assert pe_buffer.shape[0] >= S_pad, "positional-encoding buffer shorter than padded seq"

    ids_i32 = ids.astype(jnp.int32)
    if S_pad != S:
        ids_i32 = jnp.pad(ids_i32, ((0, 0), (0, S_pad - S)))   # pad ids are a valid index (0)
    # Clamp: VMEM refs have no bounds check, so a bad id must never address adjacent memory.
    ids_flat = jnp.clip(ids_i32.reshape(-1), 0, V - 1)          # (B * S_pad,) -> SMEM prefetch

    pe_slab = pe_buffer[:S_pad].astype(out_dtype)

    grid = (S_pad // TS, B)                                     # batch innermost

    grid_spec = pltpu.PrefetchScalarGridSpec(
        num_scalar_prefetch=1,                                  # ids -> SMEM
        grid=grid,
        in_specs=[
            # Full table resident in VMEM, single-buffered (block index never changes).
            pl.BlockSpec((V, D), lambda s, b, ids: (0, 0), pipeline_mode=pl.Buffered(1)),
            # Whole PE slab resident (<= max_len*D*4 = 256 KiB) -> one DMA total.
            pl.BlockSpec((S_pad, D), lambda s, b, ids: (0, 0)),
        ],
        out_specs=pl.BlockSpec((1, TS, D), lambda s, b, ids: (b, s, 0)),
    )

    itemsize = jnp.dtype(out_dtype).itemsize
    tokens = B * S_pad
    table_bytes = V * D * itemsize                              # single-buffered
    pe_bytes = 2 * S_pad * D * itemsize                         # default double-buffer (tiny)
    out_tile_bytes = 2 * TS * D * itemsize
    # TODO(synk): when table_bytes approaches ~48 MiB (v7x), use the HBM DMA-gather path.
    vmem_limit = int(min(table_bytes + pe_bytes + out_tile_bytes + (16 << 20), 96 << 20))

    cost = pl.CostEstimate(
        flops=2 * tokens * D,
        transcendentals=0,
        bytes_accessed=int(
            tokens * D * 2 * itemsize            # gather reads + output writes
            + table_bytes + S_pad * D * itemsize # table + PE residency
            + tokens * 4                         # ids
        ),
    )

    out = pl.pallas_call(
        _embedder_kernel,
        out_shape=jax.ShapeDtypeStruct((B, S_pad, D), out_dtype),
        grid_spec=grid_spec,
        compiler_params=pltpu.CompilerParams(
            dimension_semantics=("parallel", "parallel"),       # megacore / 2-TC split
            vmem_limit_bytes=vmem_limit,
        ),
        cost_estimate=cost,
    )(ids_flat, table, pe_slab)

    return out[:, :S, :] if S_pad != S else out


if __name__ == "__main__":
    # Small, module-consistent shapes: batch=2, seq=8, vocab=32, dim_hidden=128 (module default).
    B, S = 2, 8
    SIZE_VOCAB = 32
    DIM_HIDDEN = 128
    ID_PAD = 0
    MAX_LEN = 512

    key = jax.random.PRNGKey(0)
    k_tbl, k_ids = jax.random.split(key)

    # nn.Embedding init ~ N(0,1); padding_idx row zeroed.
    table = jax.random.normal(k_tbl, (SIZE_VOCAB, DIM_HIDDEN), dtype=jnp.float32)
    table = table.at[ID_PAD].set(0.0)

    # Positional-encoding buffer (module slices pe[:, :x.size(1)]).
    pe_full = make_positional_encoding(DIM_HIDDEN, MAX_LEN)

    ids = jax.random.randint(k_ids, (B, S), 0, SIZE_VOCAB, dtype=jnp.int32)

    out = simple_embedder_forward(ids, table, pe_full)
    out = jax.block_until_ready(out)

    # Pure-JAX reference: lut(ids) * sqrt(D) + pe[:S]  (Dropout identity in eval mode).
    ref = table[ids] * math.sqrt(DIM_HIDDEN) + pe_full[:S][None, :, :]
    assert out.shape == (B, S, DIM_HIDDEN)
    assert jnp.allclose(out, ref, atol=1e-5, rtol=1e-5)

    print("KERNEL_OK")
</pallas_src>

<mosaic_0001>
module attributes {stable_mosaic.version = 11 : i64} {
  func.func @_embedder_kernel(%arg0: i32, %arg1: i32, %arg2: memref<16xi32, #tpu.memory_space<smem>>, %arg3: memref<32x128xf32, #tpu.memory_space<vmem>>, %arg4: memref<8x128xf32, #tpu.memory_space<vmem>>, %arg5: memref<1x8x128xf32, #tpu.memory_space<vmem>>) attributes {dimension_semantics = [#tpu.dimension_semantics<parallel>, #tpu.dimension_semantics<parallel>], iteration_bounds = array<i64: 1, 2>, scalar_prefetch = 1 : i64, scratch_operands = 0 : i64, tpu.core_type = #tpu.core_type<tc>, window_params = [{pipeline_mode = #tpu.pipeline_mode<synchronous>, transform_indices = @transform_0, window_bounds = array<i64: 32, 128>}, {pipeline_mode = #tpu.pipeline_mode<synchronous>, transform_indices = @transform_1, window_bounds = array<i64: 8, 128>}, {transform_indices = @transform_2, window_bounds = array<i64: 1, 8, 128>}]} {
    %c8_i32 = arith.constant 8 : i32
    %0 = arith.muli %arg1, %c8_i32 : i32
    %c8_i32_0 = arith.constant 8 : i32
    %1 = arith.muli %arg0, %c8_i32_0 : i32
    %2 = arith.addi %0, %1 : i32
    %c8_i32_1 = arith.constant 8 : i32
    %3 = arith.muli %arg0, %c8_i32_1 : i32
    %cst = arith.constant 11.3137083 : f32
    %c0_i32 = arith.constant 0 : i32
    %c8_i32_2 = arith.constant 8 : i32
    %4 = arith.muli %c0_i32, %c8_i32_2 : i32
    %5 = tpu.assume_multiple %4, 8 : i32
    %6 = arith.addi %2, %5 : i32
    %c0_i32_3 = arith.constant 0 : i32
    %7 = arith.addi %6, %c0_i32_3 : i32
    %8 = arith.index_cast %7 : i32 to index
    %9 = memref.load %arg2[%8] : memref<16xi32, #tpu.memory_space<smem>>
    %10 = arith.index_cast %9 : i32 to index
    %c0 = arith.constant 0 : index
    %11 = vector.load %arg3[%10, %c0] : memref<32x128xf32, #tpu.memory_space<vmem>>, vector<1x128xf32>
    %12 = arith.addi %2, %5 : i32
    %c1_i32 = arith.constant 1 : i32
    %13 = arith.addi %12, %c1_i32 : i32
    %14 = arith.index_cast %13 : i32 to index
    %15 = memref.load %arg2[%14] : memref<16xi32, #tpu.memory_space<smem>>
    %16 = arith.index_cast %15 : i32 to index
    %c0_4 = arith.constant 0 : index
    %17 = vector.load %arg3[%16, %c0_4] : memref<32x128xf32, #tpu.memory_space<vmem>>, vector<1x128xf32>
    %18 = arith.addi %2, %5 : i32
    %c2_i32 = arith.constant 2 : i32
    %19 = arith.addi %18, %c2_i32 : i32
    %20 = arith.index_cast %19 : i32 to index
    %21 = memref.load %arg2[%20] : memref<16xi32, #tpu.memory_space<smem>>
    %22 = arith.index_cast %21 : i32 to index
    %c0_5 = arith.constant 0 : index
    %23 = vector.load %arg3[%22, %c0_5] : memref<32x128xf32, #tpu.memory_space<vmem>>, vector<1x128xf32>
    %24 = arith.addi %2, %5 : i32
    %c3_i32 = arith.constant 3 : i32
    %25 = arith.addi %24, %c3_i32 : i32
    %26 = arith.index_cast %25 : i32 to index
    %27 = memref.load %arg2[%26] : memref<16xi32, #tpu.memory_space<smem>>
    %28 = arith.index_cast %27 : i32 to index
    %c0_6 = arith.constant 0 : index
    %29 = vector.load %arg3[%28, %c0_6] : memref<32x128xf32, #tpu.memory_space<vmem>>, vector<1x128xf32>
    %30 = arith.addi %2, %5 : i32
    %c4_i32 = arith.constant 4 : i32
    %31 = arith.addi %30, %c4_i32 : i32
    %32 = arith.index_cast %31 : i32 to index
    %33 = memref.load %arg2[%32] : memref<16xi32, #tpu.memory_space<smem>>
    %34 = arith.index_cast %33 : i32 to index
    %c0_7 = arith.constant 0 : index
    %35 = vector.load %arg3[%34, %c0_7] : memref<32x128xf32, #tpu.memory_space<vmem>>, vector<1x128xf32>
    %36 = arith.addi %2, %5 : i32
    %c5_i32 = arith.constant 5 : i32
    %37 = arith.addi %36, %c5_i32 : i32
    %38 = arith.index_cast %37 : i32 to index
    %39 = memref.load %arg2[%38] : memref<16xi32, #tpu.memory_space<smem>>
    %40 = arith.index_cast %39 : i32 to index
    %c0_8 = arith.constant 0 : index
    %41 = vector.load %arg3[%40, %c0_8] : memref<32x128xf32, #tpu.memory_space<vmem>>, vector<1x128xf32>
    %42 = arith.addi %2, %5 : i32
    %c6_i32 = arith.constant 6 : i32
    %43 = arith.addi %42, %c6_i32 : i32
    %44 = arith.index_cast %43 : i32 to index
    %45 = memref.load %arg2[%44] : memref<16xi32, #tpu.memory_space<smem>>
    %46 = arith.index_cast %45 : i32 to index
    %c0_9 = arith.constant 0 : index
    %47 = vector.load %arg3[%46, %c0_9] : memref<32x128xf32, #tpu.memory_space<vmem>>, vector<1x128xf32>
    %48 = arith.addi %2, %5 : i32
    %c7_i32 = arith.constant 7 : i32
    %49 = arith.addi %48, %c7_i32 : i32
    %50 = arith.index_cast %49 : i32 to index
    %51 = memref.load %arg2[%50] : memref<16xi32, #tpu.memory_space<smem>>
    %52 = arith.index_cast %51 : i32 to index
    %c0_10 = arith.constant 0 : index
    %53 = vector.load %arg3[%52, %c0_10] : memref<32x128xf32, #tpu.memory_space<vmem>>, vector<1x128xf32>
    %54 = tpu.concatenate %11, %17, %23, %29, %35, %41, %47, %53 in 0 : vector<1x128xf32>, vector<1x128xf32>, vector<1x128xf32>, vector<1x128xf32>, vector<1x128xf32>, vector<1x128xf32>, vector<1x128xf32>, vector<1x128xf32> -> vector<8x128xf32>
    %55 = arith.addi %3, %5 : i32
    %56 = tpu.assume_multiple %55, 8 : i32
    %57 = arith.index_cast %56 : i32 to index
    %c0_11 = arith.constant 0 : index
    %58 = vector.load %arg4[%57, %c0_11] : memref<8x128xf32, #tpu.memory_space<vmem>>, vector<8x128xf32>
    %59 = vector.broadcast %cst : f32 to vector<8x128xf32>
    %60 = arith.mulf %54, %59 : vector<8x128xf32>
    %61 = arith.addf %60, %58 : vector<8x128xf32>
    %c0_12 = arith.constant 0 : index
    %62 = arith.index_cast %5 : i32 to index
    %c0_13 = arith.constant 0 : index
    %63 = vector.load %arg5[%c0_12, %62, %c0_13] : memref<1x8x128xf32, #tpu.memory_space<vmem>>, vector<1x8x128xf32>
    %64 = vector.shape_cast %63 : vector<1x8x128xf32> to vector<8x128xf32>
    %65 = vector.shape_cast %61 : vector<8x128xf32> to vector<1x8x128xf32>
    tpu.vector_store %arg5[%c0_12, %62, %c0_13], %65 {strides = array<i32>} : memref<1x8x128xf32, #tpu.memory_space<vmem>>, vector<1x8x128xf32>,
    %c1_i32_14 = arith.constant 1 : i32
    return
  }
  func.func @transform_0(%arg0: i32, %arg1: i32, %arg2: memref<16xi32, #tpu.memory_space<smem>>) -> (i32, i32) {
    %c0_i32 = arith.constant 0 : i32
    %c0_i32_0 = arith.constant 0 : i32
    %c0_i32_1 = arith.constant 0 : i32
    return %c0_i32, %c0_i32_0 : i32, i32
  }
  func.func @transform_1(%arg0: i32, %arg1: i32, %arg2: memref<16xi32, #tpu.memory_space<smem>>) -> (i32, i32) {
    %c0_i32 = arith.constant 0 : i32
    %c0_i32_0 = arith.constant 0 : i32
    %c0_i32_1 = arith.constant 0 : i32
    return %c0_i32, %c0_i32_0 : i32, i32
  }
  func.func @transform_2(%arg0: i32, %arg1: i32, %arg2: memref<16xi32, #tpu.memory_space<smem>>) -> (i32, i32, i32) {
    %c0_i32 = arith.constant 0 : i32
    %c0_i32_0 = arith.constant 0 : i32
    return %arg1, %arg0, %c0_i32 : i32, i32, i32
  }
}

</mosaic_0001>

<llo_original>
// kernel: simple_embedder_forward.1
$region0: #{simple_embedder_forward.1}
  #allocation0 [shape = 'u32[]', space=smem, size = 0x4, offset = 0x4, fixed_abs, tag = 'smem constant byte address 0x4 - core index']
  #allocation1 [shape = 'u32[144,128]{1,0:T(1,128)}', space=vmem, size = 0x12000, scoped, tag = 'internal scratch']
  #allocation2 [shape = 's32[1]{0}', space=sflag, size = 0x4, scoped, tag = 'scoped memory for simple_embedder_forward.1']
  #allocation3 [shape = 'u8[512]{0}', space=smem, size = 0x200, scoped, tag = 'prefetched SMEM operand 0']
  %s0 = inlined_call_operand.vmem [shape: s32[16], index: 0, kind: input, shape index: {}]
  %s1 = inlined_call_operand.hbm [shape: f32[32,128], index: 1, kind: input, shape index: {}]
  %s2 = inlined_call_operand.vmem [shape: f32[8,128], index: 2, kind: input, shape index: {}]
  %s3 = inlined_call_operand.hbm [shape: f32[2,8,128], index: 3, kind: output, shape index: {}]
  %s4 = sld [smem:[#allocation0]]
  $region45: #{simple_embedder_forward.1} parent=0
    _
  %s6 = ssub.s32 1, %s4
  %s7 = scalar_select 0, %s6, %s4
  %s8 = sshll.u32 %s0, 4
  %s9 = int_to_ptr.vmem [resolvable:$true] %s8
  %11 = dma.vmem_to_smem %s9, 16, [#allocation3], [#allocation2]
  %12 = dma.done [#allocation2], 16
  %13 = sfence
  $region1: #{simple_embedder_forward.1} parent=0
    #allocation4 [shape = 'u8[16384]{0}', space=vmem, size = 0x4000, scoped, tag = 'input window, operand 1, single buffered']
    #allocation5 [shape = 's32[2]{0}', space=sflag, size = 0x8, scoped, tag = 'scoped memory for simple_embedder_forward.1']
    #allocation6 [shape = 's32[2]{0}', space=sflag, size = 0x8, scoped, tag = 'scoped memory for simple_embedder_forward.1']
    #allocation7 [shape = 'u8[8192]{0}', space=vmem, size = 0x2000, scoped, tag = 'output window, operand 0']
    %14 = vsyncpa [#allocation5], 0
    %15 = vsyncpa [#allocation6], 0
    %s16 = scalar_lea.sflag [#allocation6], 1
    %17 = vsyncpa %s16, 0
    loop: start=0, step=1, limit=4
    $region2: #{simple_embedder_forward.1} parent=1 // loop_pre_header
      _
    $region3: #{simple_embedder_forward.1} parent=1 // loop_header
      %s19 = sphi 0, %s23
      %p20 = scmp.ge.s32.totalorder %s19, 4
      %s26 = sphi 0, %s38
      %s27 = sphi 0, %s34
      %s28 = sphi 0, %s26
      %s29 = sphi 0, %s27
      %s30 = sphi 0, %s28
      %s31 = sphi 0, %s29
      %s39 = sphi 0, %s39
      %s41 = sphi 0, %s39
      %s42 = sphi 0, %s41
      %s56 = sphi 0, %s42
      %s60 = sphi 0, %s60
      %s62 = sphi 0, %s60
      %s63 = sphi 0, %s62
      %s77 = sphi 0, %s63
      %s85 = sphi 0, %s87
      %s88 = sphi 0, %s85
      %s89 = sphi 0, %s88
      %s105 = sphi 0, %s89
    $region4: #{simple_embedder_forward.1} parent=1 // loop_header_branch
      %22 = sbr.rel (%p20) target = $region8
    $region5: #{simple_embedder_forward.1} parent=1 // loop_body
      %s24 = ssub.s32 %s19, 1
      %s25 = ssub.s32 %s19, 2
      %s32 = sadd.s32 1, %s27
      %p33 = scmp.ge.s32.totalorder %s32, 2
      %s34 = scalar_select %p33, 0, %s32
      %s35 = sadd.s32 1, %s26
      %s36 = scalar_select %p33, %s35, %s26
      %p37 = scmp.ge.s32.totalorder %s36, 1
      %s38 = scalar_select %p37, 0, %s36
      %s40 = sadd.s32 %s39, 1
      %p43 = scmp.eq.s32.totalorder %s19, 1
      %p44 = scmp.ne.s32.totalorder %s39, %s41
      %p45 = scmp.eq.s32.totalorder %s19, 0
      %p46 = por %p44, %p45
      %p47 = scmp.ne.s32.totalorder %s39, %s41
      %p48 = scmp.eq.s32.totalorder %s24, 1
      %p49 = por %p47, %p48
      %p50 = scmp.ne.s32.totalorder %s41, %s42
      %p51 = scmp.eq.s32.totalorder %s24, 0
      %p52 = por %p50, %p51
      %p53 = scmp.ne.s32.totalorder %s41, %s42
      %p54 = scmp.eq.s32.totalorder %s25, 1
      %p55 = por %p53, %p54
      %p57 = scmp.ne.s32.totalorder %s42, %s56
      %p58 = scmp.eq.s32.totalorder %s25, 0
      %p59 = por %p57, %p58
      %s61 = sadd.s32 %s60, 1
      %p64 = scmp.eq.s32.totalorder %s19, 1
      %p65 = scmp.ne.s32.totalorder %s60, %s62
      %p66 = scmp.eq.s32.totalorder %s19, 0
      %p67 = por %p65, %p66
      %p68 = scmp.ne.s32.totalorder %s60, %s62
      %p69 = scmp.eq.s32.totalorder %s24, 1
      %p70 = por %p68, %p69
      %p71 = scmp.ne.s32.totalorder %s62, %s63
      %p72 = scmp.eq.s32.totalorder %s24, 0
      %p73 = por %p71, %p72
      %p74 = scmp.ne.s32.totalorder %s62, %s63
      %p75 = scmp.eq.s32.totalorder %s25, 1
      %p76 = por %p74, %p75
      %p78 = scmp.ne.s32.totalorder %s63, %s77
      %p79 = scmp.eq.s32.totalorder %s25, 0
      %p80 = por %p78, %p79
      %s81 = ssub.s32 %s27, %s34
      %s82 = ssub.s32 %s26, %s38
      %s83 = sor.u32 %s81, %s82
      %p84 = scmp.eq.s32.totalorder %s83, 0
      %s86 = sadd.s32 %s85, 1
      %s87 = scalar_select %p84, %s85, %s86
      %p90 = pneg %p84
      %p91 = scmp.eq.s32.totalorder %s19, 1
      %p92 = por %p90, %p91
      %p93 = scmp.ne.s32.totalorder %s85, %s88
      %p94 = scmp.eq.s32.totalorder %s19, 0
      %p95 = por %p93, %p94
      %p96 = scmp.ne.s32.totalorder %s85, %s88
      %p97 = scmp.eq.s32.totalorder %s24, 1
      %p98 = por %p96, %p97
      %p99 = scmp.ne.s32.totalorder %s88, %s89
      %p100 = scmp.eq.s32.totalorder %s24, 0
      %p101 = por %p99, %p100
      %p102 = scmp.ne.s32.totalorder %s88, %s89
      %p103 = scmp.eq.s32.totalorder %s25, 1
      %p104 = por %p102, %p103
      %p106 = scmp.ne.s32.totalorder %s89, %s105
      %p107 = scmp.eq.s32.totalorder %s25, 0
      %p108 = por %p106, %p107
      %p109 = scmp.le.s32.totalorder 1, %s19
      %p110 = scmp.lt.s32.totalorder %s19, 3
      %p111 = pnand %p109, %p110
      %p112 = pneg %p111
      // Predicated region
      $region9: #{simple_embedder_forward.1} parent=5 // pred_check
        _
      $region10: #{simple_embedder_forward.1} parent=5 // pred_check_branch
        %114 = sbr.rel (%p111) target = $region12
      $region11: #{simple_embedder_forward.1} parent=5 // pred_region
        %s115 = ssub.s32 %s19, 1
        // Predicated region
        $region13: #{simple_embedder_forward.1} parent=11 // pred_check
          %p116 = pneg %p52
        $region14: #{simple_embedder_forward.1} parent=11 // pred_check_branch
          %118 = sbr.rel (%p116) target = $region16
        $region15: #{simple_embedder_forward.1} parent=11 // pred_region
          %s120 = ssub.s32 512, 512
          %121 = vsyncadd [#allocation5], %s120
          %s122 = sshll.u32 [#allocation4], 4
          %s123 = int_to_ptr.vmem [resolvable:$true] %s122
          %128 = dma.hbm_to_vmem [thread:$0]  %s1, 512, %s123, [#allocation5], 128, 128, 8
        $region16: #{simple_embedder_forward.1} parent=11 // pred_fallthru
          _
        // Predicated region
        $region17: #{simple_embedder_forward.1} parent=11 // pred_check
          %p129 = pneg %p73
        $region18: #{simple_embedder_forward.1} parent=11 // pred_check_branch
          %131 = sbr.rel (%p129) target = $region20
        $region19: #{simple_embedder_forward.1} parent=11 // pred_region
          _
        $region20: #{simple_embedder_forward.1} parent=11 // pred_fallthru
          _
      $region12: #{simple_embedder_forward.1} parent=5 // pred_fallthru
        _
      %p132 = scmp.lt.s32.totalorder %s19, 2
      // Predicated region
      $region21: #{simple_embedder_forward.1} parent=5 // pred_check
        %p133 = pneg %p132
      $region22: #{simple_embedder_forward.1} parent=5 // pred_check_branch
        %135 = sbr.rel (%p133) target = $region24
      $region23: #{simple_embedder_forward.1} parent=5 // pred_region
        _
      $region24: #{simple_embedder_forward.1} parent=5 // pred_fallthru
        _
      %p136 = scmp.le.s32.totalorder 1, %s19
      %p137 = scmp.lt.s32.totalorder %s19, 3
      %p138 = pnand %p136, %p137
      %p139 = pneg %p138
      // Predicated region
      $region25: #{simple_embedder_forward.1} parent=5 // pred_check
        _
      $region26: #{simple_embedder_forward.1} parent=5 // pred_check_branch
        %141 = sbr.rel (%p138) target = $region28
      $region27: #{simple_embedder_forward.1} parent=5 // pred_region
        %s142 = ssub.s32 %s19, 1
        // Predicated region
        $region29: #{simple_embedder_forward.1} parent=27 // pred_check
          %p143 = pneg %p52
        $region30: #{simple_embedder_forward.1} parent=27 // pred_check_branch
          %145 = sbr.rel (%p143) target = $region32
        $region31: #{simple_embedder_forward.1} parent=27 // pred_region
          %146 = dma.done [#allocation5], 512
        $region32: #{simple_embedder_forward.1} parent=27 // pred_fallthru
          _
        %p147 = pneg %p52
        %p148 = pneg %p49
        %p149 = pneg %p73
        %p150 = pneg %p70
        %p151 = pneg %p101
        %p152 = pneg %p98
        %s153 = sand.u32 %s88, 1
        %s154 = scalar_lea.sflag [#allocation6], %s153
        %s155 = sand.u32 %s88, 1
        %s156 = smul.addr %s155, 8
        %s157 = scalar_lea.vmem [#allocation7], %s156
        %s158 = smul.u32 %s29, 8
        %s159 = smul.u32 %s28, 8
        %s160 = sadd.s32 %s158, %s159
        %s161 = sadd.s32 %s160, 0
        %s162 = sld [smem:[#allocation3 + %s161]]
        %s163 = scalar_lea.vmem [#allocation4], %s162
        %v164 = vld [vmem:[%s163] sm:$0x1]
        %s165 = sadd.s32 %s161, 1
        %s166 = sld [smem:[#allocation3 + %s165]]
        %s167 = scalar_lea.vmem [#allocation4], %s166
        %v168 = vld [vmem:[%s167] sm:$0x1]
        %s169 = sadd.s32 %s161, 2
        %s170 = sld [smem:[#allocation3 + %s169]]
        %s171 = scalar_lea.vmem [#allocation4], %s170
        %v172 = vld [vmem:[%s171] sm:$0x1]
        %s173 = sadd.s32 %s161, 3
        %s174 = sld [smem:[#allocation3 + %s173]]
        %s175 = scalar_lea.vmem [#allocation4], %s174
        %v176 = vld [vmem:[%s175] sm:$0x1]
        %s177 = sadd.s32 %s161, 4
        %s178 = sld [smem:[#allocation3 + %s177]]
        %s179 = scalar_lea.vmem [#allocation4], %s178
        %v180 = vld [vmem:[%s179] sm:$0x1]
        %s181 = sadd.s32 %s161, 5
        %s182 = sld [smem:[#allocation3 + %s181]]
        %s183 = scalar_lea.vmem [#allocation4], %s182
        %v184 = vld [vmem:[%s183] sm:$0x1]
        %s185 = sadd.s32 %s161, 6
        %s186 = sld [smem:[#allocation3 + %s185]]
        %s187 = scalar_lea.vmem [#allocation4], %s186
        %v188 = vld [vmem:[%s187] sm:$0x1]
        %s189 = sadd.s32 %s161, 7
        %s190 = sld [smem:[#allocation3 + %s189]]
        %s191 = scalar_lea.vmem [#allocation4], %s190
        %v192 = vld [vmem:[%s191] sm:$0x1]
        %v194 = vrot.slane %v168, 7
        %v197 = vrot.slane %v172, 6
        %v200 = vrot.slane %v176, 5
        %v203 = vrot.slane %v180, 4
        %v206 = vrot.slane %v184, 3
        %v209 = vrot.slane %v188, 2
        %v212 = vrot.slane %v192, 1
        %vm214 = vcmask 1040384
        %v215 = vsel %vm214, %v164, %v194
        %vm216 = vcmask 1041408
        %v217 = vsel %vm216, %v215, %v197
        %vm218 = vcmask 1042432
        %v219 = vsel %vm218, %v217, %v200
        %vm220 = vcmask 1043456
        %v221 = vsel %vm220, %v219, %v203
        %vm222 = vcmask 1044480
        %v223 = vsel %vm222, %v221, %v206
        %vm224 = vcmask 1045504
        %v225 = vsel %vm224, %v223, %v209
        %vm226 = vcmask 1046528
        %v227 = vsel %vm226, %v225, %v212
        %s228 = sadd.s32 %s159, 0
        %s229 = scalar_lea.vmem %s2, %s228
        %v230 = vld [vmem:[%s229] sm:$0xff]
        %v231 = vmul.f32 %v227, 11.313708
        %v232 = vadd.f32 %v231, %v230
        %233 = vst [vmem:[%s157] sm:$0xff] %v232
        %s234 = sand.u32 %s88, 1
        %s235 = scalar_lea.sflag [#allocation6], %s234
        %s236 = sand.u32 %s88, 1
        %s237 = smul.addr %s236, 8
        %s238 = scalar_lea.vmem [#allocation7], %s237
        // Predicated region
        $region33: #{simple_embedder_forward.1} parent=27 // pred_check
          %p239 = pneg %p98
        $region34: #{simple_embedder_forward.1} parent=27 // pred_check_branch
          %241 = sbr.rel (%p239) target = $region36
        $region35: #{simple_embedder_forward.1} parent=27 // pred_region
          %s243 = ssub.s32 128, 128
          %244 = vsyncadd %s235, %s243
          %s245 = sadd.s32 %s28, %s29
          %s246 = smul.addr %s245, 128
          %s247 = scalar_lea.hbm %s3, %s246
          %s249 = sshll.u32 %s238, 4
          %s250 = int_to_ptr.vmem [resolvable:$true] %s249
          %252 = dma.vmem_to_hbm [thread:$0]  %s250, 128, %s247, %s235
        $region36: #{simple_embedder_forward.1} parent=27 // pred_fallthru
          _
      $region28: #{simple_embedder_forward.1} parent=5 // pred_fallthru
        _
      %p253 = scmp.le.s32.totalorder 2, %s19
      // Predicated region
      $region37: #{simple_embedder_forward.1} parent=5 // pred_check
        %p254 = pneg %p253
      $region38: #{simple_embedder_forward.1} parent=5 // pred_check_branch
        %256 = sbr.rel (%p254) target = $region40
      $region39: #{simple_embedder_forward.1} parent=5 // pred_region
        %s257 = ssub.s32 %s19, 2
        // Predicated region
        $region41: #{simple_embedder_forward.1} parent=39 // pred_check
          %p258 = pneg %p104
        $region42: #{simple_embedder_forward.1} parent=39 // pred_check_branch
          %260 = sbr.rel (%p258) target = $region44
        $region43: #{simple_embedder_forward.1} parent=39 // pred_region
          %s261 = sand.u32 %s89, 1
          %s262 = scalar_lea.sflag [#allocation6], %s261
          %s263 = sand.u32 %s89, 1
          %s264 = smul.addr %s263, 8
          %s265 = scalar_lea.vmem [#allocation7], %s264
          %266 = dma.done %s262, 128
        $region44: #{simple_embedder_forward.1} parent=39 // pred_fallthru
          _
      $region40: #{simple_embedder_forward.1} parent=5 // pred_fallthru
        _
    $region6: #{simple_embedder_forward.1} parent=1 // loop_footer
      %s23 = sadd.s32 1, %s19
    $region7: #{simple_embedder_forward.1} parent=1 // loop_footer_branch
      %18 = sbr.rel target = $region3
    $region8: #{simple_embedder_forward.1} parent=1 // loop_exit
      _
    %267 = vsyncpa [#allocation5], 1
    %s268 = scalar_lea.sflag [#allocation5], 1
    %269 = vsyncpa %s268, 1
    %270 = vsyncpa [#allocation6], 1
    %s271 = scalar_lea.sflag [#allocation6], 1
    %272 = vsyncpa %s271, 1

</llo_original>
